<compile_context>
chip_gen: v5e
topology: v5e:2x2
jax: 0.10.0
libtpu: 0.0.40
codegen_flags: <defaults>
</compile_context>

<pallas_src>
import jax
import jax.numpy as jnp
from jax import lax
from jax.experimental import pallas as pl
from jax.experimental.pallas import tpu as pltpu


def _interval_embedding_kernel(x_ref, w1_ref, b1_ref, emb_ref, out_ref):
    # x_ref:   (B, tl)    -- time intervals for this L-tile
    # w1_ref:  (K, 1)     -- Linear(1, K).weight as a column vector
    # b1_ref:  (K, 1)     -- Linear(1, K).bias as a column vector
    # emb_ref: (K, H)     -- Embedding(K, H).weight
    # out_ref: (B, tl, H)
    B = x_ref.shape[0]

    x = x_ref[...]          # (B, tl)
    w1 = w1_ref[...]        # (K, 1)
    b1 = b1_ref[...]        # (K, 1)
    emb = emb_ref[...]      # (K, H)

    # Linear(1, K), lane-dense per batch row: logit_b[k, l] = x[b, l]*w1[k]+b1[k].
    # (The bias is constant along the batch-axis softmax and cancels exactly,
    # but it is kept for strict parity with the PyTorch graph -- it is one
    # cheap lane-dense add per batch row.)
    logits = [x[b:b + 1, :] * w1 + b1 for b in range(B)]        # B x (K, tl)

    # nn.Softmax() with implicit dim on a 3-D tensor -> softmax over dim 0
    # (the batch axis), computed here as unrolled 2-D lane-dense ops.
    m = logits[0]
    for b in range(1, B):
        m = jnp.maximum(m, logits[b])                           # (K, tl)
    exps = [jnp.exp(logits[b] - m) for b in range(B)]           # B x (K, tl)
    s = exps[0]
    for b in range(1, B):
        s = s + exps[b]                                         # (K, tl)
    inv = 1.0 / s           # exact division for parity with PyTorch

    # Contraction over bins: transposed-LHS MXU dot, (K, tl)^T @ (K, H).
    # The implied (K, tl) transpose rides the otherwise-idle XLU slot and the
    # (tl, H) result stays lane-dense for the store.
    for b in range(B):
        p_b = exps[b] * inv                                     # (K, tl)
        out_ref[b] = lax.dot_general(
            p_b, emb,
            dimension_numbers=(((0,), (0,)), ((), ())),         # p_b^T @ emb
            preferred_element_type=jnp.float32,
        ).astype(out_ref.dtype)


def _round_up(v, m):
    return ((v + m - 1) // m) * m


def _choose_tile(L, B, H, K,
                 budget_bytes=24 * 1024 * 1024,   # conservative: safe on v7x
                 cap=2048):
    """Pick the L tile size (tl) and the padded length Lp (= grid * tl)."""
    l8 = _round_up(L, 8)
    if l8 <= 512:
        # Tiny sequence: a single tile; block == (padded) full array dims, so
        # the (8, 128) constraint is satisfied without 128-alignment.
        return l8, l8

    # Per unit of L (lane-dense (K, tl) softmax layout):
    #   double-buffered output block : 2 * B * H * 4
    #   double-buffered x block      : 2 * B * 4
    #   softmax temporaries (K on sublanes, spilled to VMEM): ~4 * B * K * 4
    per_l = 4 * B * (2 * H + 2 + 4 * K)
    budget_l = max(128, (budget_bytes // per_l) // 128 * 128)
    tl_max = min(cap, budget_l)

    # At least 2 grid steps so the "parallel" axis can split across v7x's two
    # TensorCores and the output writeback is software-pipelined; tl is a
    # multiple of 128 so the x block's last dim stays lane-aligned.
    n = max(2, pl.cdiv(l8, tl_max))
    tl = _round_up(pl.cdiv(l8, n), 128)
    return tl, n * tl


def interval_embedding(x, w1, b1, emb):
    """x: (B, L) f32, w1/b1: (1, K) f32, emb: (K, H) f32 -> (B, L, H) f32."""
    B, L = x.shape
    K, H = emb.shape
    tl, Lp = _choose_tile(L, B, H, K)

    if Lp != L:
        # Zero-pad L: the batch-axis softmax never mixes different l columns,
        # so padded columns are independent, finite, and sliced off below.
        x = jnp.pad(x, ((0, 0), (0, Lp - L)))

    # Column layouts so the bins sit on sublanes inside the kernel.
    w1c = jnp.reshape(w1, (K, 1))
    b1c = jnp.reshape(b1, (K, 1))

    grid = (Lp // tl,)
    out = pl.pallas_call(
        _interval_embedding_kernel,
        out_shape=jax.ShapeDtypeStruct((B, Lp, H), jnp.float32),
        grid_spec=pltpu.PrefetchScalarGridSpec(
            num_scalar_prefetch=0,
            grid=grid,
            in_specs=[
                pl.BlockSpec((B, tl), lambda i: (0, i)),
                pl.BlockSpec((K, 1), lambda i: (0, 0)),
                pl.BlockSpec((K, 1), lambda i: (0, 0)),
                pl.BlockSpec((K, H), lambda i: (0, 0)),
            ],
            out_specs=pl.BlockSpec((B, tl, H), lambda i: (0, i, 0)),
        ),
        compiler_params=pltpu.CompilerParams(
            dimension_semantics=("parallel",),
            vmem_limit_bytes=40 * 1024 * 1024,
        ),
    )(x, w1c, b1c, emb)

    if Lp != L:
        out = out[:, :L, :]
    return out


def _reference(x, w1, b1, emb):
    logit = x[:, :, None] * w1[None, :, :] + b1[None, :, :]
    p = jax.nn.softmax(logit, axis=0)   # PyTorch implicit dim=0 for 3-D input
    return jnp.einsum("blk,kh->blh", p, emb,
                      precision=jax.lax.Precision.HIGHEST)


def _run_and_check(key, B, L, num_bins, hidden):
    kx, kw, kb, ke = jax.random.split(key, 4)
    # Input: (B, L) positive time intervals.
    x = jax.random.uniform(kx, (B, L), jnp.float32, minval=0.0, maxval=10.0)
    # Parameter init (shapes from __init__):
    #   nn.Linear(1, num_bins): weight (num_bins, 1) -> row (1, num_bins),
    #     bias (num_bins,); fan_in = 1 -> uniform(-1, 1) for both.
    #   nn.Embedding(num_bins, hidden): weight ~ N(0, 1).
    w1 = jax.random.uniform(kw, (1, num_bins), jnp.float32, minval=-1.0, maxval=1.0)
    b1 = jax.random.uniform(kb, (1, num_bins), jnp.float32, minval=-1.0, maxval=1.0)
    emb = jax.random.normal(ke, (num_bins, hidden), jnp.float32)

    out = jax.block_until_ready(interval_embedding(x, w1, b1, emb))
    ref = _reference(x, w1, b1, emb)
    assert out.shape == (B, L, hidden)
    assert jnp.allclose(out, ref, atol=1e-4, rtol=1e-4), "mismatch vs JAX reference"


if __name__ == "__main__":
    key = jax.random.PRNGKey(0)
    k1, k2 = jax.random.split(key)

    # Small config matching the module's toy shapes (single tile, H < 128).
    _run_and_check(k1, B=2, L=8, num_bins=16, hidden=32)

    # Larger config exercising L tiling (2-step pipelined/parallel grid),
    # padding (L not a multiple of tl) and the lane-dense output path (H=128).
    _run_and_check(k2, B=4, L=1000, num_bins=16, hidden=128)

    print("KERNEL_OK")
</pallas_src>

<mosaic_0001>
module attributes {stable_mosaic.version = 11 : i64} {
  func.func @_interval_embedding_kernel(%arg0: i32, %arg1: memref<2x8xf32, #tpu.memory_space<vmem>>, %arg2: memref<16x1xf32, #tpu.memory_space<vmem>>, %arg3: memref<16x1xf32, #tpu.memory_space<vmem>>, %arg4: memref<16x32xf32, #tpu.memory_space<vmem>>, %arg5: memref<2x8x32xf32, #tpu.memory_space<vmem>>) attributes {dimension_semantics = [#tpu.dimension_semantics<parallel>], iteration_bounds = array<i64: 1>, scalar_prefetch = 0 : i64, scratch_operands = 0 : i64, tpu.core_type = #tpu.core_type<tc>, window_params = [{transform_indices = @transform_0, window_bounds = array<i64: 2, 8>}, {pipeline_mode = #tpu.pipeline_mode<synchronous>, transform_indices = @transform_1, window_bounds = array<i64: 16, 1>}, {pipeline_mode = #tpu.pipeline_mode<synchronous>, transform_indices = @transform_2, window_bounds = array<i64: 16, 1>}, {pipeline_mode = #tpu.pipeline_mode<synchronous>, transform_indices = @transform_3, window_bounds = array<i64: 16, 32>}, {transform_indices = @transform_4, window_bounds = array<i64: 2, 8, 32>}]} {
    %c0 = arith.constant 0 : index
    %c0_0 = arith.constant 0 : index
    %0 = vector.load %arg1[%c0, %c0_0] : memref<2x8xf32, #tpu.memory_space<vmem>>, vector<2x8xf32>
    %c0_1 = arith.constant 0 : index
    %c0_2 = arith.constant 0 : index
    %1 = vector.load %arg2[%c0_1, %c0_2] : memref<16x1xf32, #tpu.memory_space<vmem>>, vector<16x1xf32>
    %c0_3 = arith.constant 0 : index
    %c0_4 = arith.constant 0 : index
    %2 = vector.load %arg3[%c0_3, %c0_4] : memref<16x1xf32, #tpu.memory_space<vmem>>, vector<16x1xf32>
    %c0_5 = arith.constant 0 : index
    %c0_6 = arith.constant 0 : index
    %3 = vector.load %arg4[%c0_5, %c0_6] : memref<16x32xf32, #tpu.memory_space<vmem>>, vector<16x32xf32>
    %4 = vector.extract_strided_slice %0 {offsets = [0, 0], sizes = [1, 8], strides = [1, 1]} : vector<2x8xf32> to vector<1x8xf32>
    %5 = vector.broadcast %4 : vector<1x8xf32> to vector<16x8xf32>
    %6 = vector.broadcast %1 : vector<16x1xf32> to vector<16x8xf32>
    %7 = arith.mulf %5, %6 : vector<16x8xf32>
    %8 = vector.broadcast %2 : vector<16x1xf32> to vector<16x8xf32>
    %9 = arith.addf %7, %8 : vector<16x8xf32>
    %10 = vector.extract_strided_slice %0 {offsets = [1, 0], sizes = [1, 8], strides = [1, 1]} : vector<2x8xf32> to vector<1x8xf32>
    %11 = vector.broadcast %10 : vector<1x8xf32> to vector<16x8xf32>
    %12 = vector.broadcast %1 : vector<16x1xf32> to vector<16x8xf32>
    %13 = arith.mulf %11, %12 : vector<16x8xf32>
    %14 = vector.broadcast %2 : vector<16x1xf32> to vector<16x8xf32>
    %15 = arith.addf %13, %14 : vector<16x8xf32>
    %16 = arith.maximumf %9, %15 : vector<16x8xf32>
    %17 = arith.subf %9, %16 : vector<16x8xf32>
    %18 = math.exp %17 : vector<16x8xf32>
    %19 = arith.subf %15, %16 : vector<16x8xf32>
    %20 = math.exp %19 : vector<16x8xf32>
    %21 = arith.addf %18, %20 : vector<16x8xf32>
    %cst = arith.constant 1.000000e+00 : f32
    %22 = vector.broadcast %cst : f32 to vector<16x8xf32>
    %23 = arith.divf %22, %21 : vector<16x8xf32>
    %24 = arith.mulf %18, %23 : vector<16x8xf32>
    %cst_7 = arith.constant dense<0.000000e+00> : vector<8x32xf32>
    %25 = tpu.matmul %24, %3, %cst_7 {dimension_numbers = #tpu.dot_dimension_numbers<[0], [0], [1], [1], [0, 1, 1, 1], [], []>} : vector<16x8xf32>, vector<16x32xf32>, vector<8x32xf32> -> vector<8x32xf32>
    %c0_8 = arith.constant 0 : index
    %c0_9 = arith.constant 0 : index
    %c0_10 = arith.constant 0 : index
    %26 = vector.load %arg5[%c0_8, %c0_9, %c0_10] : memref<2x8x32xf32, #tpu.memory_space<vmem>>, vector<1x8x32xf32>
    %27 = vector.shape_cast %26 : vector<1x8x32xf32> to vector<8x32xf32>
    %28 = vector.shape_cast %25 : vector<8x32xf32> to vector<1x8x32xf32>
    tpu.vector_store %arg5[%c0_8, %c0_9, %c0_10], %28 {strides = array<i32>} : memref<2x8x32xf32, #tpu.memory_space<vmem>>, vector<1x8x32xf32>,
    %29 = arith.mulf %20, %23 : vector<16x8xf32>
    %cst_11 = arith.constant dense<0.000000e+00> : vector<8x32xf32>
    %30 = tpu.matmul %29, %3, %cst_11 {dimension_numbers = #tpu.dot_dimension_numbers<[0], [0], [1], [1], [0, 1, 1, 1], [], []>} : vector<16x8xf32>, vector<16x32xf32>, vector<8x32xf32> -> vector<8x32xf32>
    %c1 = arith.constant 1 : index
    %c0_12 = arith.constant 0 : index
    %c0_13 = arith.constant 0 : index
    %31 = vector.load %arg5[%c1, %c0_12, %c0_13] : memref<2x8x32xf32, #tpu.memory_space<vmem>>, vector<1x8x32xf32>
    %32 = vector.shape_cast %31 : vector<1x8x32xf32> to vector<8x32xf32>
    %33 = vector.shape_cast %30 : vector<8x32xf32> to vector<1x8x32xf32>
    tpu.vector_store %arg5[%c1, %c0_12, %c0_13], %33 {strides = array<i32>} : memref<2x8x32xf32, #tpu.memory_space<vmem>>, vector<1x8x32xf32>,
    return
  }
  func.func @transform_0(%arg0: i32) -> (i32, i32) {
    %c0_i32 = arith.constant 0 : i32
    %c0_i32_0 = arith.constant 0 : i32
    return %c0_i32, %arg0 : i32, i32
  }
  func.func @transform_1(%arg0: i32) -> (i32, i32) {
    %c0_i32 = arith.constant 0 : i32
    %c0_i32_0 = arith.constant 0 : i32
    %c0_i32_1 = arith.constant 0 : i32
    return %c0_i32, %c0_i32_0 : i32, i32
  }
  func.func @transform_2(%arg0: i32) -> (i32, i32) {
    %c0_i32 = arith.constant 0 : i32
    %c0_i32_0 = arith.constant 0 : i32
    %c0_i32_1 = arith.constant 0 : i32
    return %c0_i32, %c0_i32_0 : i32, i32
  }
  func.func @transform_3(%arg0: i32) -> (i32, i32) {
    %c0_i32 = arith.constant 0 : i32
    %c0_i32_0 = arith.constant 0 : i32
    %c0_i32_1 = arith.constant 0 : i32
    return %c0_i32, %c0_i32_0 : i32, i32
  }
  func.func @transform_4(%arg0: i32) -> (i32, i32, i32) {
    %c0_i32 = arith.constant 0 : i32
    %c0_i32_0 = arith.constant 0 : i32
    %c0_i32_1 = arith.constant 0 : i32
    return %c0_i32, %arg0, %c0_i32_0 : i32, i32, i32
  }
}

</mosaic_0001>

<llo_original>
// kernel: tpu_custom_call.1
$region0: #{tpu_custom_call.1}
  #allocation0 [shape = 'u32[]', space=smem, size = 0x4, offset = 0x4, fixed_abs, tag = 'smem constant byte address 0x4 - core index']
  #allocation1 [shape = 'u32[72,128]{1,0:T(1,128)}', space=vmem, size = 0x9000, scoped, tag = 'internal scratch']
  %s0 = inlined_call_operand.vmem [shape: f32[2,8], index: 0, kind: input, shape index: {}]
  %s1 = inlined_call_operand.vmem [shape: f32[16,1], index: 1, kind: input, shape index: {}]
  %s2 = inlined_call_operand.vmem [shape: f32[16,1], index: 2, kind: input, shape index: {}]
  %s3 = inlined_call_operand.vmem [shape: f32[16,32], index: 3, kind: input, shape index: {}]
  %s4 = inlined_call_operand.hbm [shape: f32[2,8,32], index: 4, kind: output, shape index: {}]
  %s5 = sld [smem:[#allocation0]]
  $region26: #{tpu_custom_call.1} parent=0
    _
  %s7 = ssub.s32 1, %s5
  %s8 = scalar_select 0, %s7, %s5
  $region1: #{tpu_custom_call.1} parent=0
    #allocation2 [shape = 'u8[8192]{0}', space=vmem, size = 0x2000, scoped, tag = 'output window, operand 0, single buffered']
    #allocation3 [shape = 's32[1]{0}', space=sflag, size = 0x4, scoped, tag = 'scoped memory for tpu_custom_call.1']
    %9 = vsyncpa [#allocation3], 0
    // Predicated region
    $region2: #{tpu_custom_call.1} parent=1 // pred_check
      _
    $region3: #{tpu_custom_call.1} parent=1 // pred_check_branch
      %11 = sbr.rel (0) target = $region5
    $region4: #{tpu_custom_call.1} parent=1 // pred_region
      _
    $region5: #{tpu_custom_call.1} parent=1 // pred_fallthru
      _
    // Predicated region
    $region6: #{tpu_custom_call.1} parent=1 // pred_check
      _
    $region7: #{tpu_custom_call.1} parent=1 // pred_check_branch
      %13 = sbr.rel (0) target = $region9
    $region8: #{tpu_custom_call.1} parent=1 // pred_region
      _
    $region9: #{tpu_custom_call.1} parent=1 // pred_fallthru
      _
    // Predicated region
    $region10: #{tpu_custom_call.1} parent=1 // pred_check
      _
    $region11: #{tpu_custom_call.1} parent=1 // pred_check_branch
      %15 = sbr.rel (0) target = $region13
    $region12: #{tpu_custom_call.1} parent=1 // pred_region
      _
    $region13: #{tpu_custom_call.1} parent=1 // pred_fallthru
      _
    // Predicated region
    $region14: #{tpu_custom_call.1} parent=1 // pred_check
      _
    $region15: #{tpu_custom_call.1} parent=1 // pred_check_branch
      %17 = sbr.rel (0) target = $region17
    $region16: #{tpu_custom_call.1} parent=1 // pred_region
      _
    $region17: #{tpu_custom_call.1} parent=1 // pred_fallthru
      _
    %v18 = vld [vmem:[%s0] sm:$0x3]
    %v19 = vld [vmem:[%s1] sm:$0xff]
    %v20 = vld [vmem:[%s1 + $0x8] sm:$0xff]
    %v21 = vld [vmem:[%s2] sm:$0xff]
    %v22 = vld [vmem:[%s2 + $0x8] sm:$0xff]
    %v23 = vld [vmem:[%s3] sm:$0xff]
    %v24 = vld [vmem:[%s3 + $0x8] sm:$0xff]
    %v25 = vperm.slane %v18, 0
    %27 = vset.pattern.permute.xlu0 0
    %28 = vperm.xlu0 %27, %v19
    %v29 = vpop.permute.xlu0 %28
    %32 = vset.pattern.permute.xlu0 0
    %33 = vperm.xlu0 %32, %v20
    %v34 = vpop.permute.xlu0 %33
    %v36 = vmul.f32 %v25, %v29
    %v37 = vmul.f32 %v25, %v34
    %39 = vset.pattern.permute.xlu0 0
    %40 = vperm.xlu0 %39, %v21
    %v41 = vpop.permute.xlu0 %40
    %44 = vset.pattern.permute.xlu0 0
    %45 = vperm.xlu0 %44, %v22
    %v46 = vpop.permute.xlu0 %45
    %v48 = vadd.f32 %v36, %v41
    %v49 = vadd.f32 %v37, %v46
    %v50 = vperm.slane %v18, 1
    %v51 = vmul.f32 %v50, %v29
    %v52 = vmul.f32 %v50, %v34
    %v53 = vadd.f32 %v51, %v41
    %v54 = vadd.f32 %v52, %v46
    %v55 = vmax.f32 %v48, %v53
    %v56 = vmax.f32 %v49, %v54
    %v57 = vsub.f32 %v48, %v55
    %v58 = vsub.f32 %v49, %v56
    %v59 = vmul.f32 %v57, 1.442695
    %v60 = vpow.pop %v59
    %v61 = vmul.f32 %v58, 1.442695
    %v62 = vpow.pop %v61
    %v63 = vsub.f32 %v53, %v55
    %v64 = vsub.f32 %v54, %v56
    %v65 = vmul.f32 %v63, 1.442695
    %v66 = vpow.pop %v65
    %v67 = vmul.f32 %v64, 1.442695
    %v68 = vpow.pop %v67
    %v69 = vadd.f32 %v60, %v66
    %v70 = vadd.f32 %v62, %v68
    %v71 = vrcp.pop %v69
    %v72 = vmul.f32 %v69, %v71
    %v73 = vsub.f32 1.0, %v72
    %v74 = vmul.f32 %v71, %v73
    %v75 = vadd.f32 %v71, %v74
    %vm76 = vweird.f32 %v69
    %vm77 = vweird.f32 %v71
    %vm78 = vmor %vm76, %vm77
    %v79 = vsel %vm78, %v71, %v75
    %v80 = vand.u32 2147483647, %v69
    %vm81 = vcmp.eq.f32.partialorder %v80, 8.507059e+37
    %v82 = vand.u32 %v69, 2147483648
    %v83 = vor.u32 1.1754944e-38, %v82
    %v84 = vsel %vm81, %v83, %v79
    %v85 = vmul.f32 1.0, %v84
    %v86 = vrcp.pop %v70
    %v87 = vmul.f32 %v70, %v86
    %v88 = vsub.f32 1.0, %v87
    %v89 = vmul.f32 %v86, %v88
    %v90 = vadd.f32 %v86, %v89
    %vm91 = vweird.f32 %v70
    %vm92 = vweird.f32 %v86
    %vm93 = vmor %vm91, %vm92
    %v94 = vsel %vm93, %v86, %v90
    %v95 = vand.u32 2147483647, %v70
    %vm96 = vcmp.eq.f32.partialorder %v95, 8.507059e+37
    %v97 = vand.u32 %v70, 2147483648
    %v98 = vor.u32 1.1754944e-38, %v97
    %v99 = vsel %vm96, %v98, %v94
    %v100 = vmul.f32 1.0, %v99
    %v101 = vmul.f32 %v60, %v85
    %v102 = vmul.f32 %v62, %v100
    %103 = vxpose.xlu0.b32.start [1/16] %v101, 128
    %104 = vxpose.xlu0.b32.cont [2/16] %v102, 128
    %105 = vxpose.xlu0.b32.cont [3/16] 0.0, 128
    %106 = vxpose.xlu0.b32.cont [4/16] 0.0, 128
    %107 = vxpose.xlu0.b32.cont [5/16] 0.0, 128
    %108 = vxpose.xlu0.b32.cont [6/16] 0.0, 128
    %109 = vxpose.xlu0.b32.cont [7/16] 0.0, 128
    %110 = vxpose.xlu0.b32.cont [8/16] 0.0, 128
    %111 = vxpose.xlu0.b32.cont [9/16] 0.0, 128
    %112 = vxpose.xlu0.b32.cont [10/16] 0.0, 128
    %113 = vxpose.xlu0.b32.cont [11/16] 0.0, 128
    %114 = vxpose.xlu0.b32.cont [12/16] 0.0, 128
    %115 = vxpose.xlu0.b32.cont [13/16] 0.0, 128
    %116 = vxpose.xlu0.b32.cont [14/16] 0.0, 128
    %117 = vxpose.xlu0.b32.cont [15/16] 0.0, 128
    %118 = vxpose.xlu0.b32.end [16/16] 0.0, 128
    %v119 = vpop.trf.xlu0
    %v120 = vpop.trf.xlu0
    %v121 = vpop.trf.xlu0
    %v122 = vpop.trf.xlu0
    %v123 = vpop.trf.xlu0
    %v124 = vpop.trf.xlu0
    %v125 = vpop.trf.xlu0
    %v126 = vpop.trf.xlu0
    %v127 = vpop.trf.xlu0
    %v128 = vpop.trf.xlu0
    %v129 = vpop.trf.xlu0
    %v130 = vpop.trf.xlu0
    %v131 = vpop.trf.xlu0
    %v132 = vpop.trf.xlu0
    %v133 = vpop.trf.xlu0
    %v134 = vpop.trf.xlu0
    %vm135 = vcmask 130048
    %v137 = vsel %vm135, %v119, 0
    %139 = vmatpush.msra.mxu0 0.0
    %140 = vmatpush.msra.mxu0 0.0
    %141 = vmatpush.msra.mxu0 0.0
    %142 = vmatpush.msra.mxu0 0.0
    %143 = vmatpush.msra.mxu0 0.0
    %144 = vmatpush.msra.mxu0 0.0
    %145 = vmatpush.msra.mxu0 0.0
    %146 = vmatpush.msra.mxu0 0.0
    %147 = vmatpush.msra.mxu0 0.0
    %148 = vmatpush.msra.mxu0 0.0
    %149 = vmatpush.msra.mxu0 0.0
    %150 = vmatpush.msra.mxu0 0.0
    %151 = vmatpush.msra.mxu0 0.0
    %152 = vmatpush.msra.mxu0 0.0
    %153 = vmatpush.msra.mxu0 %v24
    %154 = vmatpush.msra.mxu0 %v23
    %155 = vmatmul.f32.gmra.mxu0 %v137
    %v156 = vpop.f32.mrf.mxu0
    %v157 = vadd.f32 0.0, %v156
    %158 = vdwg.mxu0
    %vm159 = vcmask 261120
    %160 = vst.msk [vmem:[#allocation2] sm:$0xff] %vm159, %v157
    %v161 = vmul.f32 %v66, %v85
    %v162 = vmul.f32 %v68, %v100
    %163 = vxpose.xlu0.b32.start [1/16] %v161, 128
    %164 = vxpose.xlu0.b32.cont [2/16] %v162, 128
    %165 = vxpose.xlu0.b32.cont [3/16] 0.0, 128
    %166 = vxpose.xlu0.b32.cont [4/16] 0.0, 128
    %167 = vxpose.xlu0.b32.cont [5/16] 0.0, 128
    %168 = vxpose.xlu0.b32.cont [6/16] 0.0, 128
    %169 = vxpose.xlu0.b32.cont [7/16] 0.0, 128
    %170 = vxpose.xlu0.b32.cont [8/16] 0.0, 128
    %171 = vxpose.xlu0.b32.cont [9/16] 0.0, 128
    %172 = vxpose.xlu0.b32.cont [10/16] 0.0, 128
    %173 = vxpose.xlu0.b32.cont [11/16] 0.0, 128
    %174 = vxpose.xlu0.b32.cont [12/16] 0.0, 128
    %175 = vxpose.xlu0.b32.cont [13/16] 0.0, 128
    %176 = vxpose.xlu0.b32.cont [14/16] 0.0, 128
    %177 = vxpose.xlu0.b32.cont [15/16] 0.0, 128
    %178 = vxpose.xlu0.b32.end [16/16] 0.0, 128
    %v179 = vpop.trf.xlu0
    %v180 = vpop.trf.xlu0
    %v181 = vpop.trf.xlu0
    %v182 = vpop.trf.xlu0
    %v183 = vpop.trf.xlu0
    %v184 = vpop.trf.xlu0
    %v185 = vpop.trf.xlu0
    %v186 = vpop.trf.xlu0
    %v187 = vpop.trf.xlu0
    %v188 = vpop.trf.xlu0
    %v189 = vpop.trf.xlu0
    %v190 = vpop.trf.xlu0
    %v191 = vpop.trf.xlu0
    %v192 = vpop.trf.xlu0
    %v193 = vpop.trf.xlu0
    %v194 = vpop.trf.xlu0
    %v196 = vsel %vm135, %v179, 0
    %198 = vmatpush.msra.mxu0 0.0
    %199 = vmatpush.msra.mxu0 0.0
    %200 = vmatpush.msra.mxu0 0.0
    %201 = vmatpush.msra.mxu0 0.0
    %202 = vmatpush.msra.mxu0 0.0
    %203 = vmatpush.msra.mxu0 0.0
    %204 = vmatpush.msra.mxu0 0.0
    %205 = vmatpush.msra.mxu0 0.0
    %206 = vmatpush.msra.mxu0 0.0
    %207 = vmatpush.msra.mxu0 0.0
    %208 = vmatpush.msra.mxu0 0.0
    %209 = vmatpush.msra.mxu0 0.0
    %210 = vmatpush.msra.mxu0 0.0
    %211 = vmatpush.msra.mxu0 0.0
    %212 = vmatpush.msra.mxu0 %v24
    %213 = vmatpush.msra.mxu0 %v23
    %214 = vmatmul.f32.gmra.mxu0 %v196
    %v215 = vpop.f32.mrf.mxu0
    %v216 = vadd.f32 0.0, %v215
    %217 = vdwg.mxu0
    %s218 = scalar_lea.vmem [#allocation2], 8
    %219 = vst.msk [vmem:[%s218] sm:$0xff] %vm159, %v216
    // Predicated region
    $region18: #{tpu_custom_call.1} parent=1 // pred_check
      _
    $region19: #{tpu_custom_call.1} parent=1 // pred_check_branch
      %221 = sbr.rel (0) target = $region21
    $region20: #{tpu_custom_call.1} parent=1 // pred_region
      %223 = vsyncadd [#allocation3], 0
      %s224 = sshll.u32 [#allocation2], 4
      %s225 = int_to_ptr.vmem [resolvable:$true] %s224
      %s226 = sshll.u32 %s4, 4
      %s227 = int_to_ptr.hbm [resolvable:$true] %s226
      %232 = dma.vmem_to_hbm [thread:$0]  %s225, 256, %s227, [#allocation3], 128, 128, 8
    $region21: #{tpu_custom_call.1} parent=1 // pred_fallthru
      _
    // Predicated region
    $region22: #{tpu_custom_call.1} parent=1 // pred_check
      _
    $region23: #{tpu_custom_call.1} parent=1 // pred_check_branch
      %234 = sbr.rel (0) target = $region25
    $region24: #{tpu_custom_call.1} parent=1 // pred_region
      %236 = dma.done [#allocation3], 256
    $region25: #{tpu_custom_call.1} parent=1 // pred_fallthru
      _
    %237 = vsyncpa [#allocation3], 1

</llo_original>
